<compile_context>
chip_gen: v5e
topology: v5e:2x2
jax: 0.10.0
libtpu: 0.0.40
codegen_flags: <defaults>
</compile_context>

<pallas_src>
import functools

import jax
import jax.numpy as jnp
from jax.experimental import pallas as pl
from jax.experimental.pallas import tpu as pltpu


LANE = 128
SUBLANE = 8
CHUNK_ROWS = 256                       # 256*128*4 B = 128 KiB live f32 per operand chunk
TARGET_BLOCK_BYTES = 4 * 1024 * 1024   # ~4 MiB of HBM per input per grid step
VMEM_LIMIT_BYTES = 48 * 1024 * 1024    # 24 MiB of double-buffered inputs + headroom


def _round_up(x, m):
    return ((x + m - 1) // m) * m


def _depth_loss_kernel(sr_ref, hr_ref, depth_ref, out_ref, *,
                       n_rows, block_rows, chunk_rows):
    """One grid step: accumulate exp(-|hr-sr|)*depth over a (block_rows, 128)
    tile into one (8, 128) f32 partial sum, chunk by chunk (bounded live
    ranges), and write it to this block's private output slab."""
    i = pl.program_id(0)
    num_chunks = block_rows // chunk_rows
    zero = jnp.zeros((SUBLANE, LANE), jnp.float32)

    def chunk_value(c):
        r0 = pl.multiple_of(c * chunk_rows, chunk_rows)
        sl = pl.ds(r0, chunk_rows)
        sr = sr_ref[sl, :].astype(jnp.float32)
        hr = hr_ref[sl, :].astype(jnp.float32)
        d = depth_ref[sl, :].astype(jnp.float32)
        return jnp.exp(-jnp.abs(hr - sr)) * d

    def fold(acc, val):
        # (chunk,128) -> (chunk//8, 8, 128), leading-axis sum: aligned vreg
        # adds on the VPU, no cross-lane work.
        return acc + val.reshape(chunk_rows // SUBLANE, SUBLANE, LANE).sum(axis=0)

    is_last = i == pl.num_programs(0) - 1

    @pl.when(jnp.logical_not(is_last))
    def _interior():  # mask-free fast path for interior blocks
        def body(c, acc):
            return fold(acc, chunk_value(c))
        out_ref[...] = jax.lax.fori_loop(0, num_chunks, body, zero)

    @pl.when(is_last)
    def _edge():      # ragged last block: zero rows past the real extent
        base = i * block_rows

        def body(c, acc):
            val = chunk_value(c)
            row = (base + c * chunk_rows
                   + jax.lax.broadcasted_iota(jnp.int32, val.shape, 0))
            return fold(acc, jnp.where(row < n_rows, val, 0.0))
        out_ref[...] = jax.lax.fori_loop(0, num_chunks, body, zero)


def depth_loss(sr, hr, depth, n_resblocks):
    """Pallas implementation of Depth.forward (forward value only)."""
    assert sr.shape == hr.shape == depth.shape
    n_elems = sr.size

    sr_f, hr_f, d_f = jnp.ravel(sr), jnp.ravel(hr), jnp.ravel(depth)

    rows = n_elems // LANE
    if rows < SUBLANE:   # tiny input (<1024 elems): wrapper-only path, no kernel
        rows = 0
    bulk = rows * LANE

    total = jnp.float32(0.0)

    if bulk:
        def as_tiles(x):
            # Aligned (common) case: free reshape, no copy.  Only unaligned
            # sizes pay a prefix slice here (pad path removed entirely).
            xb = x if bulk == x.size else x[:bulk]
            return xb.reshape(rows, LANE)

        sr2, hr2, d2 = as_tiles(sr_f), as_tiles(hr_f), as_tiles(d_f)

        # Dtype-aware tile: ~TARGET_BLOCK_BYTES per input per grid step
        # (8192 rows f32 / 16384 rows bf16), capped at ~rows/2 so the
        # "parallel" grid axis always has >= 2 blocks (dual-TC v7x).
        itemsize = max(x.dtype.itemsize for x in (sr2, hr2, d2))
        target_rows = max(SUBLANE, TARGET_BLOCK_BYTES // (LANE * itemsize))
        if rows >= 2 * SUBLANE:
            block_rows = min(target_rows, _round_up(pl.cdiv(rows, 2), SUBLANE))
        else:
            block_rows = SUBLANE
        chunk_rows = min(CHUNK_ROWS, block_rows)
        block_rows = (block_rows // chunk_rows) * chunk_rows  # chunk | block
        num_blocks = pl.cdiv(rows, block_rows)

        in_spec = pl.BlockSpec((block_rows, LANE), lambda i: (i, 0))
        out_spec = pl.BlockSpec((SUBLANE, LANE), lambda i: (i, 0))

        kernel = functools.partial(
            _depth_loss_kernel,
            n_rows=rows, block_rows=block_rows, chunk_rows=chunk_rows)

        bytes_accessed = (bulk * (sr2.dtype.itemsize + hr2.dtype.itemsize
                                  + d2.dtype.itemsize)
                          + num_blocks * SUBLANE * LANE * 4)

        partials = pl.pallas_call(
            kernel,
            out_shape=jax.ShapeDtypeStruct((num_blocks * SUBLANE, LANE),
                                           jnp.float32),
            grid_spec=pltpu.PrefetchScalarGridSpec(
                num_scalar_prefetch=0,
                grid=(num_blocks,),
                in_specs=[in_spec, in_spec, in_spec],
                out_specs=out_spec,
            ),
            compiler_params=pltpu.CompilerParams(
                dimension_semantics=("parallel",),
                vmem_limit_bytes=VMEM_LIMIT_BYTES,
            ),
            cost_estimate=pl.CostEstimate(
                flops=5 * bulk,
                transcendentals=bulk,
                bytes_accessed=bytes_accessed,
            ),
        )(sr2, hr2, d2)

        total = total + jnp.sum(partials)  # tiny final reduce

    if bulk != n_elems:
        # <128-element tail (or whole tiny input): trivial wrapper-side sum.
        st = sr_f[bulk:].astype(jnp.float32)
        ht = hr_f[bulk:].astype(jnp.float32)
        dt = d_f[bulk:].astype(jnp.float32)
        total = total + jnp.sum(jnp.exp(-jnp.abs(ht - st)) * dt)

    return total / (jnp.float32(n_elems) * jnp.float32(n_resblocks))


def depth_loss_ref(sr, hr, depth, n_resblocks):
    """Pure-JAX reference for verification."""
    sr = sr.astype(jnp.float32)
    hr = hr.astype(jnp.float32)
    depth = depth.astype(jnp.float32)
    return jnp.mean(jnp.exp(-jnp.abs(hr - sr)) * depth / n_resblocks)


if __name__ == "__main__":
    key = jax.random.PRNGKey(0)
    k_sr, k_hr, k_d = jax.random.split(key, 3)

    n_resblocks = 16  # deterministic stand-in for args.n_resblocks
    loss_fn = jax.jit(functools.partial(depth_loss, n_resblocks=n_resblocks))

    # 1) Main case: small NCHW-style shapes consistent with the module's forward.
    B, C, H, W = 2, 4, 16, 16
    sr = jax.random.normal(k_sr, (B, C, H, W), dtype=jnp.float32)
    hr = jax.random.normal(k_hr, (B, C, H, W), dtype=jnp.float32)
    depth = jax.random.uniform(k_d, (B, C, H, W), dtype=jnp.float32)

    loss = loss_fn(sr, hr, depth)
    jax.block_until_ready(loss)
    ref = depth_loss_ref(sr, hr, depth, n_resblocks)
    assert jnp.allclose(loss, ref, rtol=1e-5, atol=1e-6), (loss, ref)

    # 2) bf16 inputs (kept narrow in HBM, widened in-kernel).
    sr_b, hr_b, d_b = (x.astype(jnp.bfloat16) for x in (sr, hr, depth))
    loss_b = loss_fn(sr_b, hr_b, d_b)
    jax.block_until_ready(loss_b)
    ref_b = depth_loss_ref(sr_b, hr_b, d_b, n_resblocks)
    assert jnp.allclose(loss_b, ref_b, rtol=1e-4, atol=1e-6), (loss_b, ref_b)

    # 3) Unaligned size: exercises the 128-aligned bulk + wrapper tail path.
    sr_u = jax.random.normal(k_sr, (5, 431), dtype=jnp.float32)
    hr_u = jax.random.normal(k_hr, (5, 431), dtype=jnp.float32)
    d_u = jax.random.uniform(k_d, (5, 431), dtype=jnp.float32)
    loss_u = loss_fn(sr_u, hr_u, d_u)
    jax.block_until_ready(loss_u)
    ref_u = depth_loss_ref(sr_u, hr_u, d_u, n_resblocks)
    assert jnp.allclose(loss_u, ref_u, rtol=1e-5, atol=1e-6), (loss_u, ref_u)

    print("KERNEL_OK")
</pallas_src>

<mosaic_0001>
module attributes {stable_mosaic.version = 11 : i64} {
  func.func @_depth_loss_kernel(%arg0: i32, %arg1: memref<8x128xf32, #tpu.memory_space<vmem>>, %arg2: memref<8x128xf32, #tpu.memory_space<vmem>>, %arg3: memref<8x128xf32, #tpu.memory_space<vmem>>, %arg4: memref<8x128xf32, #tpu.memory_space<vmem>>) attributes {dimension_semantics = [#tpu.dimension_semantics<parallel>], iteration_bounds = array<i64: 2>, scalar_prefetch = 0 : i64, scratch_operands = 0 : i64, tpu.core_type = #tpu.core_type<tc>, window_params = [{transform_indices = @transform_0, window_bounds = array<i64: 8, 128>}, {transform_indices = @transform_1, window_bounds = array<i64: 8, 128>}, {transform_indices = @transform_2, window_bounds = array<i64: 8, 128>}, {transform_indices = @transform_3, window_bounds = array<i64: 8, 128>}]} {
    %cst = arith.constant 0.000000e+00 : f32
    %0 = vector.broadcast %cst : f32 to vector<8x128xf32>
    %c1_i32 = arith.constant 1 : i32
    %1 = arith.cmpi eq, %arg0, %c1_i32 : i32
    %true = arith.constant true
    %2 = arith.xori %1, %true : i1
    %3 = arith.extui %2 : i1 to i32
    %c0_i32 = arith.constant 0 : i32
    %4 = arith.cmpi ne, %3, %c0_i32 : i32
    scf.if %4 {
      %c0_i32_1 = arith.constant 0 : i32
      %c8_i32 = arith.constant 8 : i32
      %7 = arith.muli %c0_i32_1, %c8_i32 : i32
      %8 = tpu.assume_multiple %7, 8 : i32
      %9 = arith.index_cast %8 : i32 to index
      %c0 = arith.constant 0 : index
      %10 = vector.load %arg1[%9, %c0] : memref<8x128xf32, #tpu.memory_space<vmem>>, vector<8x128xf32>
      %11 = arith.index_cast %8 : i32 to index
      %c0_2 = arith.constant 0 : index
      %12 = vector.load %arg2[%11, %c0_2] : memref<8x128xf32, #tpu.memory_space<vmem>>, vector<8x128xf32>
      %13 = arith.index_cast %8 : i32 to index
      %c0_3 = arith.constant 0 : index
      %14 = vector.load %arg3[%13, %c0_3] : memref<8x128xf32, #tpu.memory_space<vmem>>, vector<8x128xf32>
      %15 = arith.subf %12, %10 : vector<8x128xf32>
      %16 = math.absf %15 : vector<8x128xf32>
      %cst_4 = arith.constant 0.000000e+00 : f32
      %17 = vector.broadcast %cst_4 : f32 to vector<8x128xf32>
      %18 = arith.subf %17, %16 : vector<8x128xf32>
      %19 = math.exp %18 : vector<8x128xf32>
      %20 = arith.mulf %19, %14 : vector<8x128xf32>
      %21 = vector.shape_cast %20 : vector<8x128xf32> to vector<1x8x128xf32>
      %cst_5 = arith.constant dense<0.000000e+00> : vector<8x128xf32>
      %22 = vector.multi_reduction <add>, %21, %cst_5 [0] : vector<1x8x128xf32> to vector<8x128xf32>
      %23 = arith.addf %0, %22 : vector<8x128xf32>
      %c1_i32_6 = arith.constant 1 : i32
      %c0_7 = arith.constant 0 : index
      %c0_8 = arith.constant 0 : index
      %24 = vector.load %arg4[%c0_7, %c0_8] : memref<8x128xf32, #tpu.memory_space<vmem>>, vector<8x128xf32>
      tpu.vector_store %arg4[%c0_7, %c0_8], %23 {strides = array<i32>} : memref<8x128xf32, #tpu.memory_space<vmem>>, vector<8x128xf32>,
    } else {
    }
    %5 = arith.extui %1 : i1 to i32
    %c0_i32_0 = arith.constant 0 : i32
    %6 = arith.cmpi ne, %5, %c0_i32_0 : i32
    scf.if %6 {
      %c8_i32 = arith.constant 8 : i32
      %7 = arith.muli %arg0, %c8_i32 : i32
      %c0_i32_1 = arith.constant 0 : i32
      %c8_i32_2 = arith.constant 8 : i32
      %8 = arith.muli %c0_i32_1, %c8_i32_2 : i32
      %9 = tpu.assume_multiple %8, 8 : i32
      %10 = arith.index_cast %9 : i32 to index
      %c0 = arith.constant 0 : index
      %11 = vector.load %arg1[%10, %c0] : memref<8x128xf32, #tpu.memory_space<vmem>>, vector<8x128xf32>
      %12 = arith.index_cast %9 : i32 to index
      %c0_3 = arith.constant 0 : index
      %13 = vector.load %arg2[%12, %c0_3] : memref<8x128xf32, #tpu.memory_space<vmem>>, vector<8x128xf32>
      %14 = arith.index_cast %9 : i32 to index
      %c0_4 = arith.constant 0 : index
      %15 = vector.load %arg3[%14, %c0_4] : memref<8x128xf32, #tpu.memory_space<vmem>>, vector<8x128xf32>
      %16 = arith.subf %13, %11 : vector<8x128xf32>
      %17 = math.absf %16 : vector<8x128xf32>
      %cst_5 = arith.constant 0.000000e+00 : f32
      %18 = vector.broadcast %cst_5 : f32 to vector<8x128xf32>
      %19 = arith.subf %18, %17 : vector<8x128xf32>
      %20 = math.exp %19 : vector<8x128xf32>
      %21 = arith.mulf %20, %15 : vector<8x128xf32>
      %c8_i32_6 = arith.constant 8 : i32
      %22 = arith.muli %c0_i32_1, %c8_i32_6 : i32
      %23 = arith.addi %7, %22 : i32
      %24 = tpu.iota {dimensions = array<i32: 0>} : vector<8x128xi32>
      %25 = vector.broadcast %23 : i32 to vector<8x128xi32>
      %26 = arith.addi %25, %24 : vector<8x128xi32>
      %c16_i32 = arith.constant 16 : i32
      %27 = vector.broadcast %c16_i32 : i32 to vector<8x128xi32>
      %28 = arith.cmpi slt, %26, %27 : vector<8x128xi32>
      %cst_7 = arith.constant 0.000000e+00 : f32
      %29 = vector.broadcast %cst_7 : f32 to vector<8x128xf32>
      %30 = arith.select %28, %21, %29 : vector<8x128xi1>, vector<8x128xf32>
      %31 = vector.shape_cast %30 : vector<8x128xf32> to vector<1x8x128xf32>
      %cst_8 = arith.constant dense<0.000000e+00> : vector<8x128xf32>
      %32 = vector.multi_reduction <add>, %31, %cst_8 [0] : vector<1x8x128xf32> to vector<8x128xf32>
      %33 = arith.addf %0, %32 : vector<8x128xf32>
      %c1_i32_9 = arith.constant 1 : i32
      %c0_10 = arith.constant 0 : index
      %c0_11 = arith.constant 0 : index
      %34 = vector.load %arg4[%c0_10, %c0_11] : memref<8x128xf32, #tpu.memory_space<vmem>>, vector<8x128xf32>
      tpu.vector_store %arg4[%c0_10, %c0_11], %33 {strides = array<i32>} : memref<8x128xf32, #tpu.memory_space<vmem>>, vector<8x128xf32>,
    } else {
    }
    return
  }
  func.func @transform_0(%arg0: i32) -> (i32, i32) {
    %c0_i32 = arith.constant 0 : i32
    %c0_i32_0 = arith.constant 0 : i32
    return %arg0, %c0_i32 : i32, i32
  }
  func.func @transform_1(%arg0: i32) -> (i32, i32) {
    %c0_i32 = arith.constant 0 : i32
    %c0_i32_0 = arith.constant 0 : i32
    return %arg0, %c0_i32 : i32, i32
  }
  func.func @transform_2(%arg0: i32) -> (i32, i32) {
    %c0_i32 = arith.constant 0 : i32
    %c0_i32_0 = arith.constant 0 : i32
    return %arg0, %c0_i32 : i32, i32
  }
  func.func @transform_3(%arg0: i32) -> (i32, i32) {
    %c0_i32 = arith.constant 0 : i32
    %c0_i32_0 = arith.constant 0 : i32
    return %arg0, %c0_i32 : i32, i32
  }
}

</mosaic_0001>

<llo_original>
// kernel: depth_loss.1
$region0: #{depth_loss.1}
  #allocation0 [shape = 'u32[]', space=smem, size = 0x4, offset = 0x4, fixed_abs, tag = 'smem constant byte address 0x4 - core index']
  #allocation1 [shape = 'u32[72,128]{1,0:T(1,128)}', space=vmem, size = 0x9000, scoped, tag = 'internal scratch']
  %s0 = inlined_call_operand.vmem [shape: f32[16,128], index: 0, kind: input, shape index: {}]
  %s1 = inlined_call_operand.vmem [shape: f32[16,128], index: 1, kind: input, shape index: {}]
  %s2 = inlined_call_operand.vmem [shape: f32[16,128], index: 2, kind: input, shape index: {}]
  %s3 = inlined_call_operand.vmem [shape: f32[16,128], index: 3, kind: output, shape index: {}]
  %s4 = sld [smem:[#allocation0]]
  $region53: #{depth_loss.1} parent=0
    _
  %s6 = ssub.s32 1, %s4
  %s7 = scalar_select 0, %s6, %s4
  loop: start=0, step=1, limit=4
  $region2: #{depth_loss.1} parent=0 // loop_pre_header
    _
  $region3: #{depth_loss.1} parent=0 // loop_header
    %s9 = sphi 0, %s13
    %p10 = scmp.ge.s32.totalorder %s9, 4
    %s19 = sphi 0, %s21
    %s22 = sphi 0, %s19
    %s23 = sphi 0, %s22
    %s39 = sphi 0, %s23
    %s45 = sphi 0, %s47
    %s48 = sphi 0, %s45
    %s49 = sphi 0, %s48
    %s65 = sphi 0, %s49
    %s71 = sphi 0, %s73
    %s74 = sphi 0, %s71
    %s75 = sphi 0, %s74
    %s91 = sphi 0, %s75
    %s97 = sphi 0, %s99
    %s100 = sphi 0, %s97
    %s101 = sphi 0, %s100
    %s117 = sphi 0, %s101
  $region4: #{depth_loss.1} parent=0 // loop_header_branch
    %12 = sbr.rel (%p10) target = $region8
  $region5: #{depth_loss.1} parent=0 // loop_body
    %s14 = ssub.s32 %s9, 1
    %s15 = ssub.s32 %s9, 2
    %s16 = sadd.s32 %s9, 1
    %s17 = ssub.s32 %s9, %s16
    %p18 = scmp.eq.s32.totalorder %s17, 0
    %s20 = sadd.s32 %s19, 1
    %s21 = scalar_select %p18, %s19, %s20
    %p24 = pneg %p18
    %p25 = scmp.eq.s32.totalorder %s9, 1
    %p26 = por %p24, %p25
    %p27 = scmp.ne.s32.totalorder %s19, %s22
    %p28 = scmp.eq.s32.totalorder %s9, 0
    %p29 = por %p27, %p28
    %p30 = scmp.ne.s32.totalorder %s19, %s22
    %p31 = scmp.eq.s32.totalorder %s14, 1
    %p32 = por %p30, %p31
    %p33 = scmp.ne.s32.totalorder %s22, %s23
    %p34 = scmp.eq.s32.totalorder %s14, 0
    %p35 = por %p33, %p34
    %p36 = scmp.ne.s32.totalorder %s22, %s23
    %p37 = scmp.eq.s32.totalorder %s15, 1
    %p38 = por %p36, %p37
    %p40 = scmp.ne.s32.totalorder %s23, %s39
    %p41 = scmp.eq.s32.totalorder %s15, 0
    %p42 = por %p40, %p41
    %s43 = ssub.s32 %s9, %s16
    %p44 = scmp.eq.s32.totalorder %s43, 0
    %s46 = sadd.s32 %s45, 1
    %s47 = scalar_select %p44, %s45, %s46
    %p50 = pneg %p44
    %p51 = scmp.eq.s32.totalorder %s9, 1
    %p52 = por %p50, %p51
    %p53 = scmp.ne.s32.totalorder %s45, %s48
    %p54 = scmp.eq.s32.totalorder %s9, 0
    %p55 = por %p53, %p54
    %p56 = scmp.ne.s32.totalorder %s45, %s48
    %p57 = scmp.eq.s32.totalorder %s14, 1
    %p58 = por %p56, %p57
    %p59 = scmp.ne.s32.totalorder %s48, %s49
    %p60 = scmp.eq.s32.totalorder %s14, 0
    %p61 = por %p59, %p60
    %p62 = scmp.ne.s32.totalorder %s48, %s49
    %p63 = scmp.eq.s32.totalorder %s15, 1
    %p64 = por %p62, %p63
    %p66 = scmp.ne.s32.totalorder %s49, %s65
    %p67 = scmp.eq.s32.totalorder %s15, 0
    %p68 = por %p66, %p67
    %s69 = ssub.s32 %s9, %s16
    %p70 = scmp.eq.s32.totalorder %s69, 0
    %s72 = sadd.s32 %s71, 1
    %s73 = scalar_select %p70, %s71, %s72
    %p76 = pneg %p70
    %p77 = scmp.eq.s32.totalorder %s9, 1
    %p78 = por %p76, %p77
    %p79 = scmp.ne.s32.totalorder %s71, %s74
    %p80 = scmp.eq.s32.totalorder %s9, 0
    %p81 = por %p79, %p80
    %p82 = scmp.ne.s32.totalorder %s71, %s74
    %p83 = scmp.eq.s32.totalorder %s14, 1
    %p84 = por %p82, %p83
    %p85 = scmp.ne.s32.totalorder %s74, %s75
    %p86 = scmp.eq.s32.totalorder %s14, 0
    %p87 = por %p85, %p86
    %p88 = scmp.ne.s32.totalorder %s74, %s75
    %p89 = scmp.eq.s32.totalorder %s15, 1
    %p90 = por %p88, %p89
    %p92 = scmp.ne.s32.totalorder %s75, %s91
    %p93 = scmp.eq.s32.totalorder %s15, 0
    %p94 = por %p92, %p93
    %s95 = ssub.s32 %s9, %s16
    %p96 = scmp.eq.s32.totalorder %s95, 0
    %s98 = sadd.s32 %s97, 1
    %s99 = scalar_select %p96, %s97, %s98
    %p102 = pneg %p96
    %p103 = scmp.eq.s32.totalorder %s9, 1
    %p104 = por %p102, %p103
    %p105 = scmp.ne.s32.totalorder %s97, %s100
    %p106 = scmp.eq.s32.totalorder %s9, 0
    %p107 = por %p105, %p106
    %p108 = scmp.ne.s32.totalorder %s97, %s100
    %p109 = scmp.eq.s32.totalorder %s14, 1
    %p110 = por %p108, %p109
    %p111 = scmp.ne.s32.totalorder %s100, %s101
    %p112 = scmp.eq.s32.totalorder %s14, 0
    %p113 = por %p111, %p112
    %p114 = scmp.ne.s32.totalorder %s100, %s101
    %p115 = scmp.eq.s32.totalorder %s15, 1
    %p116 = por %p114, %p115
    %p118 = scmp.ne.s32.totalorder %s101, %s117
    %p119 = scmp.eq.s32.totalorder %s15, 0
    %p120 = por %p118, %p119
    %p121 = scmp.le.s32.totalorder 1, %s9
    %p122 = scmp.lt.s32.totalorder %s9, 3
    %p123 = pnand %p121, %p122
    %p124 = pneg %p123
    // Predicated region
    $region9: #{depth_loss.1} parent=5 // pred_check
      _
    $region10: #{depth_loss.1} parent=5 // pred_check_branch
      %126 = sbr.rel (%p123) target = $region12
    $region11: #{depth_loss.1} parent=5 // pred_region
      %s127 = ssub.s32 %s9, 1
    $region12: #{depth_loss.1} parent=5 // pred_fallthru
      _
    %p128 = scmp.lt.s32.totalorder %s9, 2
    // Predicated region
    $region13: #{depth_loss.1} parent=5 // pred_check
      %p129 = pneg %p128
    $region14: #{depth_loss.1} parent=5 // pred_check_branch
      %131 = sbr.rel (%p129) target = $region16
    $region15: #{depth_loss.1} parent=5 // pred_region
      // Predicated region
      $region17: #{depth_loss.1} parent=15 // pred_check
        %p132 = pneg %p29
      $region18: #{depth_loss.1} parent=15 // pred_check_branch
        %134 = sbr.rel (%p132) target = $region20
      $region19: #{depth_loss.1} parent=15 // pred_region
        %p135 = scmp.lt.s32.totalorder %s9, 1
        %s136 = scalar_select %p135, %s9, 1
        %s137 = smul.addr %s136, 8
        %s138 = scalar_lea.vmem %s0, %s137
      $region20: #{depth_loss.1} parent=15 // pred_fallthru
        _
      // Predicated region
      $region21: #{depth_loss.1} parent=15 // pred_check
        %p139 = pneg %p55
      $region22: #{depth_loss.1} parent=15 // pred_check_branch
        %141 = sbr.rel (%p139) target = $region24
      $region23: #{depth_loss.1} parent=15 // pred_region
        %p142 = scmp.lt.s32.totalorder %s9, 1
        %s143 = scalar_select %p142, %s9, 1
        %s144 = smul.addr %s143, 8
        %s145 = scalar_lea.vmem %s1, %s144
      $region24: #{depth_loss.1} parent=15 // pred_fallthru
        _
      // Predicated region
      $region25: #{depth_loss.1} parent=15 // pred_check
        %p146 = pneg %p81
      $region26: #{depth_loss.1} parent=15 // pred_check_branch
        %148 = sbr.rel (%p146) target = $region28
      $region27: #{depth_loss.1} parent=15 // pred_region
        %p149 = scmp.lt.s32.totalorder %s9, 1
        %s150 = scalar_select %p149, %s9, 1
        %s151 = smul.addr %s150, 8
        %s152 = scalar_lea.vmem %s2, %s151
      $region28: #{depth_loss.1} parent=15 // pred_fallthru
        _
    $region16: #{depth_loss.1} parent=5 // pred_fallthru
      _
    %p153 = scmp.le.s32.totalorder 1, %s9
    %p154 = scmp.lt.s32.totalorder %s9, 3
    %p155 = pnand %p153, %p154
    %p156 = pneg %p155
    // Predicated region
    $region29: #{depth_loss.1} parent=5 // pred_check
      _
    $region30: #{depth_loss.1} parent=5 // pred_check_branch
      %158 = sbr.rel (%p155) target = $region32
    $region31: #{depth_loss.1} parent=5 // pred_region
      %s159 = ssub.s32 %s9, 1
      %p160 = scmp.lt.s32.totalorder %s14, 1
      %s161 = scalar_select %p160, %s14, 1
      %s162 = smul.addr %s161, 8
      %s163 = scalar_lea.vmem %s0, %s162
      %p164 = pneg %p35
      %p165 = pneg %p32
      %p166 = scmp.lt.s32.totalorder %s14, 1
      %s167 = scalar_select %p166, %s14, 1
      %s168 = smul.addr %s167, 8
      %s169 = scalar_lea.vmem %s1, %s168
      %p170 = pneg %p61
      %p171 = pneg %p58
      %p172 = scmp.lt.s32.totalorder %s14, 1
      %s173 = scalar_select %p172, %s14, 1
      %s174 = smul.addr %s173, 8
      %s175 = scalar_lea.vmem %s2, %s174
      %p176 = pneg %p87
      %p177 = pneg %p84
      %p178 = pneg %p113
      %p179 = pneg %p110
      %p180 = scmp.lt.s32.totalorder %s14, 1
      %s181 = scalar_select %p180, %s14, 1
      %s182 = smul.addr %s181, 8
      %s183 = scalar_lea.vmem %s3, %s182
      %p184 = scmp.lt.s32.totalorder %s14, 1
      %s185 = scalar_select %p184, %s14, 1
      %s186 = smul.addr %s185, 8
      %s187 = scalar_lea.vmem %s0, %s186
      %p188 = scmp.lt.s32.totalorder %s14, 1
      %s189 = scalar_select %p188, %s14, 1
      %s190 = smul.addr %s189, 8
      %s191 = scalar_lea.vmem %s1, %s190
      %p192 = scmp.lt.s32.totalorder %s14, 1
      %s193 = scalar_select %p192, %s14, 1
      %s194 = smul.addr %s193, 8
      %s195 = scalar_lea.vmem %s2, %s194
      %p196 = scmp.lt.s32.totalorder %s14, 1
      %s197 = scalar_select %p196, %s14, 1
      %s198 = smul.addr %s197, 8
      %s199 = scalar_lea.vmem %s3, %s198
      %p200 = scmp.eq.s32.totalorder %s14, 1
      %p201 = scmp.ne.s32.totalorder %s14, 1
      // Predicated region
      $region33: #{depth_loss.1} parent=31 // pred_check
        %p202 = pneg %p201
      $region34: #{depth_loss.1} parent=31 // pred_check_branch
        %204 = sbr.rel (%p202) target = $region36
      $region35: #{depth_loss.1} parent=31 // pred_region
        %v205 = vld [vmem:[%s187] sm:$0xff]
        %v206 = vld [vmem:[%s191] sm:$0xff]
        %v207 = vld [vmem:[%s195] sm:$0xff]
        %v208 = vsub.f32 %v206, %v205
        %v209 = vand.u32 2147483647, %v208
        %v210 = vsub.f32 0.0, %v209
        %v211 = vmul.f32 %v210, 1.442695
        %v212 = vpow.pop %v211
        %v213 = vmul.f32 %v212, %v207
        %v214 = vadd.f32 %v213, 0.0
        %v215 = vadd.f32 %v214, 0.0
        %216 = vst [vmem:[%s199] sm:$0xff] %v215
      $region36: #{depth_loss.1} parent=31 // pred_fallthru
        _
      // Predicated region
      $region37: #{depth_loss.1} parent=31 // pred_check
        %p217 = pneg %p200
      $region38: #{depth_loss.1} parent=31 // pred_check_branch
        %219 = sbr.rel (%p217) target = $region40
      $region39: #{depth_loss.1} parent=31 // pred_region
        %s220 = smul.u32 %s14, 8
        %v221 = vld [vmem:[%s187] sm:$0xff]
        %v222 = vld [vmem:[%s191] sm:$0xff]
        %v223 = vld [vmem:[%s195] sm:$0xff]
        %v224 = vsub.f32 %v222, %v221
        %v225 = vand.u32 2147483647, %v224
        %v226 = vsub.f32 0.0, %v225
        %v227 = vmul.f32 %v226, 1.442695
        %v228 = vpow.pop %v227
        %v229 = vmul.f32 %v228, %v223
        %v230 = vlaneseq
        %v231 = vshrl.u32 %v230, 7
        %v232 = vstv %s220
        %v233 = vadd.s32 %v232, %v231
        %vm234 = vcmp.lt.s32.totalorder %v233, 16
        %v235 = vsel %vm234, %v229, 0.0
        %v236 = vadd.f32 %v235, 0.0
        %v237 = vadd.f32 %v236, 0.0
        %238 = vst [vmem:[%s199] sm:$0xff] %v237
      $region40: #{depth_loss.1} parent=31 // pred_fallthru
        _
      %p239 = scmp.lt.s32.totalorder %s14, 1
      %s240 = scalar_select %p239, %s14, 1
      %s241 = smul.addr %s240, 8
      %s242 = scalar_lea.vmem %s3, %s241
      // Predicated region
      $region41: #{depth_loss.1} parent=31 // pred_check
        %p243 = pneg %p110
      $region42: #{depth_loss.1} parent=31 // pred_check_branch
        %245 = sbr.rel (%p243) target = $region44
      $region43: #{depth_loss.1} parent=31 // pred_region
        _
      $region44: #{depth_loss.1} parent=31 // pred_fallthru
        _
    $region32: #{depth_loss.1} parent=5 // pred_fallthru
      _
    %p246 = scmp.le.s32.totalorder 2, %s9
    // Predicated region
    $region45: #{depth_loss.1} parent=5 // pred_check
      %p247 = pneg %p246
    $region46: #{depth_loss.1} parent=5 // pred_check_branch
      %249 = sbr.rel (%p247) target = $region48
    $region47: #{depth_loss.1} parent=5 // pred_region
      %s250 = ssub.s32 %s9, 2
      // Predicated region
      $region49: #{depth_loss.1} parent=47 // pred_check
        %p251 = pneg %p116
      $region50: #{depth_loss.1} parent=47 // pred_check_branch
        %253 = sbr.rel (%p251) target = $region52
      $region51: #{depth_loss.1} parent=47 // pred_region
        %p254 = scmp.lt.s32.totalorder %s15, 1
        %s255 = scalar_select %p254, %s15, 1
        %s256 = smul.addr %s255, 8
        %s257 = scalar_lea.vmem %s3, %s256
      $region52: #{depth_loss.1} parent=47 // pred_fallthru
        _
    $region48: #{depth_loss.1} parent=5 // pred_fallthru
      _
  $region6: #{depth_loss.1} parent=0 // loop_footer
    %s13 = sadd.s32 1, %s9
  $region7: #{depth_loss.1} parent=0 // loop_footer_branch
    %8 = sbr.rel target = $region3
  $region8: #{depth_loss.1} parent=0 // loop_exit
    _

</llo_original>
